<compile_context>
chip_gen: v6e
topology: v6e:2x2x1
jax: 0.10.0
libtpu: 0.0.40
codegen_flags: <defaults>
</compile_context>

<pallas_src>
import functools
import math

import jax
import jax.numpy as jnp
from jax import lax
from jax.experimental import pallas as pl
from jax.experimental.pallas import tpu as pltpu

_LANES = 128
_SUBLANES = 8


def _pow_by_squaring(u, e):
    """u ** e for a positive integer e using multiplies only (VPU, NaN-safe)."""
    result = None
    base = u
    while e > 0:
        if e & 1:
            result = base if result is None else result * base
        e >>= 1
        if e:
            base = base * base
    return result


def _focal_loss_kernel(x_ref, t_ref, out_ref, acc_ref, *,
                       gamma, alpha0, alpha1, use_alpha, valid_rows, need_mask):
    """One grid step: (1, 2, TR, 128) log-prob tile + (1, TR, 128) target tile.

    Per-lane losses are folded to (8, 128) and accumulated into the resident
    scratch; the last step along the reduction axis stores a lane-dense slab."""
    j = pl.program_id(2)

    @pl.when(j == 0)
    def _():
        acc_ref[...] = jnp.zeros_like(acc_ref)

    tr = x_ref.shape[2]
    x = x_ref[...]                                   # (1, 2, TR, 128) log-probs
    x0 = x[0, 0].astype(jnp.float32)                 # class-0 log-probs (TR, 128)
    x1 = x[0, 1].astype(jnp.float32)                 # class-1 log-probs (TR, 128)
    t = t_ref[...][0]                                # (TR, 128) class ids (any int dtype)
    is0 = t.astype(jnp.int32) == 0

    logpt = jnp.where(is0, x0, x1)                   # gather(1, target) via select

    if need_mask:
        # Ragged / duplicated row blocks: zero logpt *before* exp so unspecified
        # VMEM in the OOB tail cannot produce inf/NaN (pt=1 -> focal=0 -> loss=0).
        blk = pl.program_id(1) * pl.num_programs(2) + j
        row0 = blk * tr
        row_ids = lax.broadcasted_iota(jnp.int32, (tr, _LANES), 0)
        logpt = jnp.where(row_ids < (valid_rows - row0), logpt, 0.0)

    pt = jnp.exp(logpt)
    u = 1.0 - pt
    g = float(gamma)
    if g == 0.0:
        focal = jnp.ones_like(u)
    elif g.is_integer() and g >= 1.0:
        focal = _pow_by_squaring(u, int(g))          # VPU-only, NaN-safe
    else:
        # Clamp so a numerically-positive logpt cannot yield NaN from pow.
        focal = jnp.power(jnp.maximum(u, 0.0), jnp.float32(g))

    per_lane = focal * logpt                         # (TR, 128)
    if use_alpha:
        at = jnp.where(is0, jnp.float32(alpha0), jnp.float32(alpha1))
        per_lane = at * per_lane

    # loss = -(1 - pt)^gamma * at * logpt ; fold to (8,128) now (tree reduce) so
    # there is no long serial epilogue chain at large tile sizes.
    acc_ref[...] -= jnp.sum(
        per_lane.reshape(tr // _SUBLANES, _SUBLANES, _LANES), axis=0)

    @pl.when(j == pl.num_programs(2) - 1)
    def _():
        out_ref[...] = acc_ref[...][None, None, :, :]   # (1, 1, 8, 128) lane-dense store


def _default_tile_rows():
    """Generation-aware tile size (rows of 128 lanes), sized so double-buffered
    inputs + scratch fit the default scoped VMEM of each generation."""
    try:
        kind = jax.devices()[0].device_kind.lower()
    except Exception:
        return 2048
    if ("v6" in kind) or ("v7" in kind) or ("tpu7" in kind):
        return 4096   # ~14 MiB double-buffered vs 32 MiB default scoped (v6e / v7x)
    return 2048       # ~7 MiB vs 16 MiB default scoped (v5e and older)


def focal_loss_pallas(x, target, gamma=10.0, alpha=0.99,
                      size_average=False, tile_rows=None):
    """Matches FocalLoss.forward for (N, C, *spatial) log-probabilities, C == 2."""
    if x.ndim < 3:
        raise ValueError("expected (N, C, spatial...) log-probabilities")
    n, c = int(x.shape[0]), int(x.shape[1])
    if c != 2:
        # TODO(synk): list-valued alpha with len > 2 (multi-class gather) is not supported.
        raise ValueError("binary FocalLoss kernel expects C == 2")
    if alpha is None:
        use_alpha, alpha0, alpha1 = False, 1.0, 1.0
    elif isinstance(alpha, (list, tuple)):
        if len(alpha) != 2:
            raise ValueError("alpha list must have length 2 for the binary kernel")
        use_alpha, alpha0, alpha1 = True, float(alpha[0]), float(alpha[1])
    else:
        use_alpha, alpha0, alpha1 = True, float(alpha), 1.0 - float(alpha)

    hw = int(math.prod(x.shape[2:]))
    if tile_rows is None:
        tile_rows = _default_tile_rows()

    # Spatial axis -> 128-wide lane rows. Pad ONLY when H*W is not lane-aligned
    # (or too small for an (8,128) tile); zero padding is loss-neutral
    # (logpt = 0 -> pt = 1 -> (1-pt)^g = 0).  For the common aligned case there
    # is no pad and therefore no extra HBM pass.
    hw_p = pl.cdiv(hw, _LANES) * _LANES
    if hw_p < _SUBLANES * _LANES:
        hw_p = _SUBLANES * _LANES
    rows = hw_p // _LANES                                 # >= 8

    tr = min(int(tile_rows), (rows // _SUBLANES) * _SUBLANES)
    tr = max(_SUBLANES, (tr // _SUBLANES) * _SUBLANES)    # sublane multiple, <= rows
    nb = pl.cdiv(rows, tr)                                # row blocks per image
    num_splits = 2 if nb >= 2 else 1                      # keep both v7x TCs busy at n == 1
    j_per_split = pl.cdiv(nb, num_splits)
    need_clamp = (num_splits * j_per_split != nb)         # duplicated (fully-masked) blocks
    need_mask = need_clamp or (nb * tr != rows)           # ragged last block

    # x: stream bf16 as-is when it already exists upstream (upcast in-kernel);
    # anything else as f32.
    x_flat = x.reshape(n, c, hw)
    if x_flat.dtype == jnp.bfloat16 and tr % 16 == 0:
        pass
    elif x_flat.dtype != jnp.float32:
        x_flat = x_flat.astype(jnp.float32)

    # target: stream int8/uint8 as-is when the (32,128) packing constraint holds;
    # otherwise int32.  No standalone narrowing cast is added.
    t_flat = target.reshape(n, hw)
    if t_flat.dtype in (jnp.int8, jnp.uint8) and tr % 32 == 0:
        pass
    elif t_flat.dtype != jnp.int32:
        t_flat = t_flat.astype(jnp.int32)

    if hw_p != hw:
        x_flat = jnp.pad(x_flat, ((0, 0), (0, 0), (0, hw_p - hw)))
        t_flat = jnp.pad(t_flat, ((0, 0), (0, hw_p - hw)))

    x_tiles = x_flat.reshape(n, c, rows, _LANES)          # lane-dense, no transpose
    t_tiles = t_flat.reshape(n, rows, _LANES)

    last_blk = nb - 1

    def x_index(b, s, j):
        blk = s * j_per_split + j
        if need_clamp:
            blk = jnp.minimum(blk, last_blk)              # keep the DMA in bounds
        return (b, 0, blk, 0)

    def t_index(b, s, j):
        blk = s * j_per_split + j
        if need_clamp:
            blk = jnp.minimum(blk, last_blk)
        return (b, blk, 0)

    kernel = functools.partial(
        _focal_loss_kernel, gamma=float(gamma), alpha0=alpha0, alpha1=alpha1,
        use_alpha=use_alpha, valid_rows=rows, need_mask=need_mask)

    out = pl.pallas_call(
        kernel,
        out_shape=jax.ShapeDtypeStruct((n, num_splits, _SUBLANES, _LANES), jnp.float32),
        grid_spec=pltpu.PrefetchScalarGridSpec(
            num_scalar_prefetch=0,
            grid=(n, num_splits, j_per_split),
            in_specs=[
                pl.BlockSpec((1, c, tr, _LANES), x_index),
                pl.BlockSpec((1, tr, _LANES), t_index),
            ],
            out_specs=pl.BlockSpec((1, 1, _SUBLANES, _LANES),
                                   lambda b, s, j: (b, s, 0, 0)),
            scratch_shapes=[pltpu.VMEM((_SUBLANES, _LANES), jnp.float32)],
        ),
        compiler_params=pltpu.CompilerParams(
            dimension_semantics=("parallel", "parallel", "arbitrary")),
    )(x_tiles, t_tiles)

    loss_sum = jnp.sum(out)
    if size_average:
        return loss_sum / (n * hw)
    return loss_sum


def focal_loss_ref(x, target, gamma=10.0, alpha=0.99, size_average=False):
    """Pure-JAX reference mirroring the PyTorch forward exactly."""
    n, c = x.shape[0], x.shape[1]
    hw = int(math.prod(x.shape[2:]))
    x_flat = jnp.transpose(x.reshape(n, c, hw), (0, 2, 1)).reshape(-1, c)
    t = target.reshape(-1).astype(jnp.int32)
    logpt = jnp.take_along_axis(x_flat, t[:, None], axis=1)[:, 0]
    pt = jnp.exp(logpt)
    if alpha is not None:
        if isinstance(alpha, (list, tuple)):
            alpha_vec = jnp.array(alpha, jnp.float32)
        else:
            alpha_vec = jnp.array([alpha, 1.0 - alpha], jnp.float32)
        logpt = logpt * alpha_vec[t]
    loss = -1.0 * jnp.power(1.0 - pt, gamma) * logpt
    return jnp.mean(loss) if size_average else jnp.sum(loss)


if __name__ == "__main__":
    key = jax.random.PRNGKey(0)
    k1, k2, k3, k4, k5, k6 = jax.random.split(key, 6)
    C = 2

    # --- Test 1: small padded case (N=2, 16x16), f32 x, int32 target ----------
    N, H, W = 2, 16, 16
    logits = jax.random.normal(k1, (N, C, H, W), jnp.float32)
    log_probs = jax.nn.log_softmax(logits, axis=1)   # module expects log-probabilities
    target = jax.random.randint(k2, (N, H, W), 0, 2, jnp.int32)

    loss = jax.block_until_ready(focal_loss_pallas(log_probs, target))
    ref = focal_loss_ref(log_probs, target)
    assert jnp.allclose(loss, ref, rtol=1e-4, atol=1e-5), (loss, ref)

    loss_avg = jax.block_until_ready(
        focal_loss_pallas(log_probs, target, size_average=True))
    ref_avg = focal_loss_ref(log_probs, target, size_average=True)
    assert jnp.allclose(loss_avg, ref_avg, rtol=1e-4, atol=1e-6), (loss_avg, ref_avg)

    # --- Test 2: lane-aligned no-pad case with narrow dtypes (bf16 x, uint8 t) --
    N2, H2, W2 = 1, 64, 64
    logits2 = jax.random.normal(k3, (N2, C, H2, W2), jnp.float32)
    log_probs2 = jax.nn.log_softmax(logits2, axis=1).astype(jnp.bfloat16)
    target2 = jax.random.randint(k4, (N2, H2, W2), 0, 2, jnp.int32).astype(jnp.uint8)

    loss2 = jax.block_until_ready(focal_loss_pallas(log_probs2, target2))
    ref2 = focal_loss_ref(log_probs2.astype(jnp.float32), target2.astype(jnp.int32))
    assert jnp.allclose(loss2, ref2, rtol=1e-3, atol=1e-3), (loss2, ref2)

    # --- Test 3: ragged row blocks (80x80 -> 50 rows), small tiles, 2 splits ----
    N3, H3, W3 = 1, 80, 80
    logits3 = jax.random.normal(k5, (N3, C, H3, W3), jnp.float32)
    log_probs3 = jax.nn.log_softmax(logits3, axis=1)
    target3 = jax.random.randint(k6, (N3, H3, W3), 0, 2, jnp.int32)

    loss3 = jax.block_until_ready(
        focal_loss_pallas(log_probs3, target3, tile_rows=16))
    ref3 = focal_loss_ref(log_probs3, target3)
    assert jnp.allclose(loss3, ref3, rtol=1e-4, atol=1e-5), (loss3, ref3)

    print("KERNEL_OK")
</pallas_src>

<mosaic_0001>
module attributes {stable_mosaic.version = 11 : i64} {
  func.func @_focal_loss_kernel(%arg0: i32, %arg1: i32, %arg2: i32, %arg3: memref<1x2x8x128xf32, #tpu.memory_space<vmem>>, %arg4: memref<1x8x128xi32, #tpu.memory_space<vmem>>, %arg5: memref<1x1x8x128xf32, #tpu.memory_space<vmem>>, %arg6: memref<8x128xf32, #tpu.memory_space<vmem>>) attributes {dimension_semantics = [#tpu.dimension_semantics<parallel>, #tpu.dimension_semantics<parallel>, #tpu.dimension_semantics<arbitrary>], iteration_bounds = array<i64: 2, 1, 1>, scalar_prefetch = 0 : i64, scratch_operands = 1 : i64, tpu.core_type = #tpu.core_type<tc>, window_params = [{transform_indices = @transform_0, window_bounds = array<i64: 1, 2, 8, 128>}, {transform_indices = @transform_1, window_bounds = array<i64: 1, 8, 128>}, {transform_indices = @transform_2, window_bounds = array<i64: 1, 1, 8, 128>}]} {
    %c0_i32 = arith.constant 0 : i32
    %0 = arith.cmpi eq, %arg2, %c0_i32 : i32
    %1 = arith.extui %0 : i1 to i32
    %c0_i32_0 = arith.constant 0 : i32
    %2 = arith.cmpi ne, %1, %c0_i32_0 : i32
    scf.if %2 {
      %cst_17 = arith.constant 0.000000e+00 : f32
      %33 = vector.broadcast %cst_17 : f32 to vector<8x128xf32>
      %c0_18 = arith.constant 0 : index
      %c0_19 = arith.constant 0 : index
      %34 = vector.load %arg6[%c0_18, %c0_19] : memref<8x128xf32, #tpu.memory_space<vmem>>, vector<8x128xf32>
      tpu.vector_store %arg6[%c0_18, %c0_19], %33 {strides = array<i32>} : memref<8x128xf32, #tpu.memory_space<vmem>>, vector<8x128xf32>,
    } else {
    }
    %c0 = arith.constant 0 : index
    %c0_1 = arith.constant 0 : index
    %c0_2 = arith.constant 0 : index
    %c0_3 = arith.constant 0 : index
    %3 = vector.load %arg3[%c0, %c0_1, %c0_2, %c0_3] : memref<1x2x8x128xf32, #tpu.memory_space<vmem>>, vector<1x2x8x128xf32>
    %4 = vector.extract_strided_slice %3 {offsets = [0, 0, 0, 0], sizes = [1, 1, 8, 128], strides = [1, 1, 1, 1]} : vector<1x2x8x128xf32> to vector<1x1x8x128xf32>
    %5 = vector.shape_cast %4 : vector<1x1x8x128xf32> to vector<8x128xf32>
    %6 = vector.extract_strided_slice %3 {offsets = [0, 1, 0, 0], sizes = [1, 1, 8, 128], strides = [1, 1, 1, 1]} : vector<1x2x8x128xf32> to vector<1x1x8x128xf32>
    %7 = vector.shape_cast %6 : vector<1x1x8x128xf32> to vector<8x128xf32>
    %c0_4 = arith.constant 0 : index
    %c0_5 = arith.constant 0 : index
    %c0_6 = arith.constant 0 : index
    %8 = vector.load %arg4[%c0_4, %c0_5, %c0_6] : memref<1x8x128xi32, #tpu.memory_space<vmem>>, vector<1x8x128xi32>
    %9 = vector.shape_cast %8 : vector<1x8x128xi32> to vector<8x128xi32>
    %c0_i32_7 = arith.constant 0 : i32
    %10 = vector.broadcast %c0_i32_7 : i32 to vector<8x128xi32>
    %11 = arith.cmpi eq, %9, %10 : vector<8x128xi32>
    %12 = arith.select %11, %5, %7 : vector<8x128xi1>, vector<8x128xf32>
    %13 = math.exp %12 : vector<8x128xf32>
    %cst = arith.constant 1.000000e+00 : f32
    %14 = vector.broadcast %cst : f32 to vector<8x128xf32>
    %15 = arith.subf %14, %13 : vector<8x128xf32>
    %16 = arith.mulf %15, %15 : vector<8x128xf32>
    %17 = arith.mulf %16, %16 : vector<8x128xf32>
    %18 = arith.mulf %17, %17 : vector<8x128xf32>
    %19 = arith.mulf %16, %18 : vector<8x128xf32>
    %20 = arith.mulf %19, %12 : vector<8x128xf32>
    %cst_8 = arith.constant 9.900000e-01 : f32
    %cst_9 = arith.constant 0.00999999977 : f32
    %21 = vector.broadcast %cst_8 : f32 to vector<8x128xf32>
    %22 = vector.broadcast %cst_9 : f32 to vector<8x128xf32>
    %23 = arith.select %11, %21, %22 : vector<8x128xi1>, vector<8x128xf32>
    %24 = arith.mulf %23, %20 : vector<8x128xf32>
    %c0_10 = arith.constant 0 : index
    %c0_11 = arith.constant 0 : index
    %25 = vector.load %arg6[%c0_10, %c0_11] : memref<8x128xf32, #tpu.memory_space<vmem>>, vector<8x128xf32>
    %26 = vector.shape_cast %24 : vector<8x128xf32> to vector<1x8x128xf32>
    %cst_12 = arith.constant dense<0.000000e+00> : vector<8x128xf32>
    %27 = vector.multi_reduction <add>, %26, %cst_12 [0] : vector<1x8x128xf32> to vector<8x128xf32>
    %28 = arith.subf %25, %27 : vector<8x128xf32>
    %c0_13 = arith.constant 0 : index
    %c0_14 = arith.constant 0 : index
    %29 = vector.load %arg6[%c0_13, %c0_14] : memref<8x128xf32, #tpu.memory_space<vmem>>, vector<8x128xf32>
    tpu.vector_store %arg6[%c0_13, %c0_14], %28 {strides = array<i32>} : memref<8x128xf32, #tpu.memory_space<vmem>>, vector<8x128xf32>,
    %c0_i32_15 = arith.constant 0 : i32
    %30 = arith.cmpi eq, %arg2, %c0_i32_15 : i32
    %31 = arith.extui %30 : i1 to i32
    %c0_i32_16 = arith.constant 0 : i32
    %32 = arith.cmpi ne, %31, %c0_i32_16 : i32
    scf.if %32 {
      %c0_17 = arith.constant 0 : index
      %c0_18 = arith.constant 0 : index
      %33 = vector.load %arg6[%c0_17, %c0_18] : memref<8x128xf32, #tpu.memory_space<vmem>>, vector<8x128xf32>
      %34 = vector.shape_cast %33 : vector<8x128xf32> to vector<1x1x8x128xf32>
      %c0_19 = arith.constant 0 : index
      %c0_20 = arith.constant 0 : index
      %c0_21 = arith.constant 0 : index
      %c0_22 = arith.constant 0 : index
      %35 = vector.load %arg5[%c0_19, %c0_20, %c0_21, %c0_22] : memref<1x1x8x128xf32, #tpu.memory_space<vmem>>, vector<1x1x8x128xf32>
      tpu.vector_store %arg5[%c0_19, %c0_20, %c0_21, %c0_22], %34 {strides = array<i32>} : memref<1x1x8x128xf32, #tpu.memory_space<vmem>>, vector<1x1x8x128xf32>,
    } else {
    }
    return
  }
  func.func @transform_0(%arg0: i32, %arg1: i32, %arg2: i32) -> (i32, i32, i32, i32) {
    %c1_i32 = arith.constant 1 : i32
    %0 = arith.muli %arg1, %c1_i32 : i32
    %1 = arith.addi %0, %arg2 : i32
    %c0_i32 = arith.constant 0 : i32
    %c0_i32_0 = arith.constant 0 : i32
    %c0_i32_1 = arith.constant 0 : i32
    return %arg0, %c0_i32, %1, %c0_i32_0 : i32, i32, i32, i32
  }
  func.func @transform_1(%arg0: i32, %arg1: i32, %arg2: i32) -> (i32, i32, i32) {
    %c1_i32 = arith.constant 1 : i32
    %0 = arith.muli %arg1, %c1_i32 : i32
    %1 = arith.addi %0, %arg2 : i32
    %c0_i32 = arith.constant 0 : i32
    %c0_i32_0 = arith.constant 0 : i32
    return %arg0, %1, %c0_i32 : i32, i32, i32
  }
  func.func @transform_2(%arg0: i32, %arg1: i32, %arg2: i32) -> (i32, i32, i32, i32) {
    %c0_i32 = arith.constant 0 : i32
    %c0_i32_0 = arith.constant 0 : i32
    %c0_i32_1 = arith.constant 0 : i32
    return %arg0, %arg1, %c0_i32, %c0_i32_0 : i32, i32, i32, i32
  }
}

</mosaic_0001>

<llo_original>
// kernel: tpu_custom_call.1
$region0: #{tpu_custom_call.1}
  #allocation0 [shape = 'u32[]', space=smem, size = 0x4, offset = 0x4, fixed_abs, tag = 'smem constant byte address 0x4 - core index']
  #allocation1 [shape = 'u32[144,128]{1,0:T(1,128)}', space=vmem, size = 0x12000, scoped, tag = 'internal scratch']
  #allocation2 [shape = 'f32[8,128]{1,0:T(8,128)}', space=vmem, size = 0x1000, scoped, tag = 'scratch operand']
  %s0 = inlined_call_operand.hbm [shape: f32[2,2,8,128], index: 0, kind: input, shape index: {}]
  %s1 = inlined_call_operand.hbm [shape: s32[2,8,128], index: 1, kind: input, shape index: {}]
  %s2 = inlined_call_operand.hbm [shape: f32[2,1,8,128], index: 2, kind: output, shape index: {}]
  %s3 = sld [smem:[#allocation0]]
  $region57: #{tpu_custom_call.1} parent=0
    _
  %s5 = ssub.s32 1, %s3
  %s6 = scalar_select 0, %s5, %s3
  $region1: #{tpu_custom_call.1} parent=0
    #allocation3 [shape = 'u8[16384]{0}', space=vmem, size = 0x4000, scoped, tag = 'input window, operand 0']
    #allocation4 [shape = 's32[2]{0}', space=sflag, size = 0x8, scoped, tag = 'scoped memory for tpu_custom_call.1']
    #allocation5 [shape = 's32[2]{0}', space=sflag, size = 0x8, scoped, tag = 'scoped memory for tpu_custom_call.1']
    #allocation6 [shape = 'u8[8192]{0}', space=vmem, size = 0x2000, scoped, tag = 'input window, operand 1']
    #allocation7 [shape = 's32[2]{0}', space=sflag, size = 0x8, scoped, tag = 'scoped memory for tpu_custom_call.1']
    #allocation8 [shape = 'u8[8192]{0}', space=vmem, size = 0x2000, scoped, tag = 'output window, operand 0']
    %7 = vsyncpa [#allocation4], 0
    %s8 = scalar_lea.sflag [#allocation4], 1
    %9 = vsyncpa %s8, 0
    %10 = vsyncpa [#allocation7], 0
    %s11 = scalar_lea.sflag [#allocation7], 1
    %12 = vsyncpa %s11, 0
    %13 = vsyncpa [#allocation5], 0
    %s14 = scalar_lea.sflag [#allocation5], 1
    %15 = vsyncpa %s14, 0
    loop: start=0, step=1, limit=4
    $region2: #{tpu_custom_call.1} parent=1 // loop_pre_header
      _
    $region3: #{tpu_custom_call.1} parent=1 // loop_header
      %s17 = sphi 0, %s21
      %p18 = scmp.ge.s32.totalorder %s17, 4
      %s24 = sphi 0, %s43
      %s25 = sphi 0, %s39
      %s26 = sphi 0, %s35
      %s27 = sphi 0, %s24
      %s28 = sphi 0, %s25
      %s29 = sphi 0, %s26
      %s30 = sphi 0, %s27
      %s31 = sphi 0, %s28
      %s32 = sphi 0, %s29
      %s50 = sphi 0, %s52
      %s53 = sphi 0, %s50
      %s54 = sphi 0, %s53
      %s70 = sphi 0, %s54
      %s80 = sphi 0, %s82
      %s83 = sphi 0, %s80
      %s84 = sphi 0, %s83
      %s100 = sphi 0, %s84
      %s108 = sphi 0, %s110
      %s111 = sphi 0, %s108
      %s112 = sphi 0, %s111
      %s128 = sphi 0, %s112
    $region4: #{tpu_custom_call.1} parent=1 // loop_header_branch
      %20 = sbr.rel (%p18) target = $region8
    $region5: #{tpu_custom_call.1} parent=1 // loop_body
      %s22 = ssub.s32 %s17, 1
      %s23 = ssub.s32 %s17, 2
      %s33 = sadd.s32 1, %s26
      %p34 = scmp.ge.s32.totalorder %s33, 1
      %s35 = scalar_select %p34, 0, %s33
      %s36 = sadd.s32 1, %s25
      %s37 = scalar_select %p34, %s36, %s25
      %p38 = scmp.ge.s32.totalorder %s37, 1
      %s39 = scalar_select %p38, 0, %s37
      %s40 = sadd.s32 1, %s24
      %s41 = scalar_select %p38, %s40, %s24
      %p42 = scmp.ge.s32.totalorder %s41, 2
      %s43 = scalar_select %p42, 0, %s41
      %s44 = sadd.s32 %s25, %s26
      %s45 = sadd.s32 %s39, %s35
      %s46 = ssub.s32 %s24, %s43
      %s47 = ssub.s32 %s44, %s45
      %s48 = sor.u32 %s46, %s47
      %p49 = scmp.eq.s32.totalorder %s48, 0
      %s51 = sadd.s32 %s50, 1
      %s52 = scalar_select %p49, %s50, %s51
      %p55 = pneg %p49
      %p56 = scmp.eq.s32.totalorder %s17, 1
      %p57 = por %p55, %p56
      %p58 = scmp.ne.s32.totalorder %s50, %s53
      %p59 = scmp.eq.s32.totalorder %s17, 0
      %p60 = por %p58, %p59
      %p61 = scmp.ne.s32.totalorder %s50, %s53
      %p62 = scmp.eq.s32.totalorder %s22, 1
      %p63 = por %p61, %p62
      %p64 = scmp.ne.s32.totalorder %s53, %s54
      %p65 = scmp.eq.s32.totalorder %s22, 0
      %p66 = por %p64, %p65
      %p67 = scmp.ne.s32.totalorder %s53, %s54
      %p68 = scmp.eq.s32.totalorder %s23, 1
      %p69 = por %p67, %p68
      %p71 = scmp.ne.s32.totalorder %s54, %s70
      %p72 = scmp.eq.s32.totalorder %s23, 0
      %p73 = por %p71, %p72
      %s74 = sadd.s32 %s25, %s26
      %s75 = sadd.s32 %s39, %s35
      %s76 = ssub.s32 %s24, %s43
      %s77 = ssub.s32 %s74, %s75
      %s78 = sor.u32 %s76, %s77
      %p79 = scmp.eq.s32.totalorder %s78, 0
      %s81 = sadd.s32 %s80, 1
      %s82 = scalar_select %p79, %s80, %s81
      %p85 = pneg %p79
      %p86 = scmp.eq.s32.totalorder %s17, 1
      %p87 = por %p85, %p86
      %p88 = scmp.ne.s32.totalorder %s80, %s83
      %p89 = scmp.eq.s32.totalorder %s17, 0
      %p90 = por %p88, %p89
      %p91 = scmp.ne.s32.totalorder %s80, %s83
      %p92 = scmp.eq.s32.totalorder %s22, 1
      %p93 = por %p91, %p92
      %p94 = scmp.ne.s32.totalorder %s83, %s84
      %p95 = scmp.eq.s32.totalorder %s22, 0
      %p96 = por %p94, %p95
      %p97 = scmp.ne.s32.totalorder %s83, %s84
      %p98 = scmp.eq.s32.totalorder %s23, 1
      %p99 = por %p97, %p98
      %p101 = scmp.ne.s32.totalorder %s84, %s100
      %p102 = scmp.eq.s32.totalorder %s23, 0
      %p103 = por %p101, %p102
      %s104 = ssub.s32 %s24, %s43
      %s105 = ssub.s32 %s25, %s39
      %s106 = sor.u32 %s104, %s105
      %p107 = scmp.eq.s32.totalorder %s106, 0
      %s109 = sadd.s32 %s108, 1
      %s110 = scalar_select %p107, %s108, %s109
      %p113 = pneg %p107
      %p114 = scmp.eq.s32.totalorder %s17, 1
      %p115 = por %p113, %p114
      %p116 = scmp.ne.s32.totalorder %s108, %s111
      %p117 = scmp.eq.s32.totalorder %s17, 0
      %p118 = por %p116, %p117
      %p119 = scmp.ne.s32.totalorder %s108, %s111
      %p120 = scmp.eq.s32.totalorder %s22, 1
      %p121 = por %p119, %p120
      %p122 = scmp.ne.s32.totalorder %s111, %s112
      %p123 = scmp.eq.s32.totalorder %s22, 0
      %p124 = por %p122, %p123
      %p125 = scmp.ne.s32.totalorder %s111, %s112
      %p126 = scmp.eq.s32.totalorder %s23, 1
      %p127 = por %p125, %p126
      %p129 = scmp.ne.s32.totalorder %s112, %s128
      %p130 = scmp.eq.s32.totalorder %s23, 0
      %p131 = por %p129, %p130
      %p132 = scmp.le.s32.totalorder 1, %s17
      %p133 = scmp.lt.s32.totalorder %s17, 3
      %p134 = pnand %p132, %p133
      %p135 = pneg %p134
      // Predicated region
      $region9: #{tpu_custom_call.1} parent=5 // pred_check
        _
      $region10: #{tpu_custom_call.1} parent=5 // pred_check_branch
        %137 = sbr.rel (%p134) target = $region12
      $region11: #{tpu_custom_call.1} parent=5 // pred_region
        %s138 = ssub.s32 %s17, 1
      $region12: #{tpu_custom_call.1} parent=5 // pred_fallthru
        _
      %p139 = scmp.lt.s32.totalorder %s17, 2
      // Predicated region
      $region13: #{tpu_custom_call.1} parent=5 // pred_check
        %p140 = pneg %p139
      $region14: #{tpu_custom_call.1} parent=5 // pred_check_branch
        %142 = sbr.rel (%p140) target = $region16
      $region15: #{tpu_custom_call.1} parent=5 // pred_region
        // Predicated region
        $region17: #{tpu_custom_call.1} parent=15 // pred_check
          %p143 = pneg %p60
        $region18: #{tpu_custom_call.1} parent=15 // pred_check_branch
          %145 = sbr.rel (%p143) target = $region20
        $region19: #{tpu_custom_call.1} parent=15 // pred_region
          %s146 = sand.u32 %s50, 1
          %s147 = scalar_lea.sflag [#allocation4], %s146
          %s148 = sand.u32 %s50, 1
          %s149 = smul.addr %s148, 16
          %s150 = scalar_lea.vmem [#allocation3], %s149
          %s151 = sadd.s32 %s25, %s26
          %s153 = ssub.s32 256, 256
          %154 = vsyncadd %s147, %s153
          %s155 = smul.addr %s24, 2
          %s156 = sadd.s32 %s151, %s155
          %s157 = smul.addr %s156, 128
          %s158 = scalar_lea.hbm %s0, %s157
          %s159 = sshll.u32 %s150, 4
          %s160 = int_to_ptr.vmem [resolvable:$true] %s159
          %165 = dma.hbm_to_vmem [thread:$0]  %s158, 256, %s160, %s147, 128, 128, 8
        $region20: #{tpu_custom_call.1} parent=15 // pred_fallthru
          _
        // Predicated region
        $region21: #{tpu_custom_call.1} parent=15 // pred_check
          %p166 = pneg %p90
        $region22: #{tpu_custom_call.1} parent=15 // pred_check_branch
          %168 = sbr.rel (%p166) target = $region24
        $region23: #{tpu_custom_call.1} parent=15 // pred_region
          %s169 = sand.u32 %s80, 1
          %s170 = scalar_lea.sflag [#allocation7], %s169
          %s171 = sand.u32 %s80, 1
          %s172 = smul.addr %s171, 8
          %s173 = scalar_lea.vmem [#allocation6], %s172
          %s174 = sadd.s32 %s25, %s26
          %s176 = ssub.s32 128, 128
          %177 = vsyncadd %s170, %s176
          %s178 = sadd.s32 %s174, %s24
          %s179 = smul.addr %s178, 128
          %s180 = scalar_lea.hbm %s1, %s179
          %s182 = sshll.u32 %s173, 4
          %s183 = int_to_ptr.vmem [resolvable:$true] %s182
          %185 = dma.hbm_to_vmem [thread:$0]  %s180, 128, %s183, %s170
        $region24: #{tpu_custom_call.1} parent=15 // pred_fallthru
          _
      $region16: #{tpu_custom_call.1} parent=5 // pred_fallthru
        _
      %p186 = scmp.le.s32.totalorder 1, %s17
      %p187 = scmp.lt.s32.totalorder %s17, 3
      %p188 = pnand %p186, %p187
      %p189 = pneg %p188
      // Predicated region
      $region25: #{tpu_custom_call.1} parent=5 // pred_check
        _
      $region26: #{tpu_custom_call.1} parent=5 // pred_check_branch
        %191 = sbr.rel (%p188) target = $region28
      $region27: #{tpu_custom_call.1} parent=5 // pred_region
        %s192 = ssub.s32 %s17, 1
        %s193 = sand.u32 %s53, 1
        %s194 = scalar_lea.sflag [#allocation4], %s193
        %s195 = sand.u32 %s53, 1
        %s196 = smul.addr %s195, 16
        %s197 = scalar_lea.vmem [#allocation3], %s196
        // Predicated region
        $region29: #{tpu_custom_call.1} parent=27 // pred_check
          %p198 = pneg %p66
        $region30: #{tpu_custom_call.1} parent=27 // pred_check_branch
          %200 = sbr.rel (%p198) target = $region32
        $region31: #{tpu_custom_call.1} parent=27 // pred_region
          %201 = dma.done %s194, 256
        $region32: #{tpu_custom_call.1} parent=27 // pred_fallthru
          _
        %s202 = sand.u32 %s83, 1
        %s203 = scalar_lea.sflag [#allocation7], %s202
        %s204 = sand.u32 %s83, 1
        %s205 = smul.addr %s204, 8
        %s206 = scalar_lea.vmem [#allocation6], %s205
        // Predicated region
        $region33: #{tpu_custom_call.1} parent=27 // pred_check
          %p207 = pneg %p96
        $region34: #{tpu_custom_call.1} parent=27 // pred_check_branch
          %209 = sbr.rel (%p207) target = $region36
        $region35: #{tpu_custom_call.1} parent=27 // pred_region
          %210 = dma.done %s203, 128
        $region36: #{tpu_custom_call.1} parent=27 // pred_fallthru
          _
        %s211 = sand.u32 %s53, 1
        %s212 = scalar_lea.sflag [#allocation4], %s211
        %s213 = sand.u32 %s53, 1
        %s214 = smul.addr %s213, 16
        %s215 = scalar_lea.vmem [#allocation3], %s214
        %p216 = pneg %p66
        %p217 = pneg %p63
        %s218 = sand.u32 %s83, 1
        %s219 = scalar_lea.sflag [#allocation7], %s218
        %s220 = sand.u32 %s83, 1
        %s221 = smul.addr %s220, 8
        %s222 = scalar_lea.vmem [#allocation6], %s221
        %p223 = pneg %p96
        %p224 = pneg %p93
        %p225 = pneg %p124
        %p226 = pneg %p121
        %s227 = sand.u32 %s111, 1
        %s228 = scalar_lea.sflag [#allocation5], %s227
        %s229 = sand.u32 %s111, 1
        %s230 = smul.addr %s229, 8
        %s231 = scalar_lea.vmem [#allocation8], %s230
        %s232 = sadd.s32 %s28, %s29
        %s233 = sadd.s32 %s28, %s29
        %p234 = scmp.eq.s32.totalorder %s29, 0
        // Predicated region
        $region37: #{tpu_custom_call.1} parent=27 // pred_check
          %p235 = pneg %p234
        $region38: #{tpu_custom_call.1} parent=27 // pred_check_branch
          %237 = sbr.rel (%p235) target = $region40
        $region39: #{tpu_custom_call.1} parent=27 // pred_region
          %238 = vst [vmem:[#allocation2] sm:$0xff] 0.0
        $region40: #{tpu_custom_call.1} parent=27 // pred_fallthru
          _
        %v239 = vld [vmem:[%s197] sm:$0xff]
        %v240 = vld [vmem:[%s197 + $0x8] sm:$0xff]
        %v241 = vld [vmem:[%s206] sm:$0xff]
        %vm242 = vcmp.eq.s32.totalorder %v241, 0
        %v243 = vsel %vm242, %v239, %v240
        %v244 = vmul.f32 %v243, 1.442695
        %v245 = vpow.pop %v244
        %v246 = vsub.f32 1.0, %v245
        %v247 = vmul.f32 %v246, %v246
        %v248 = vmul.f32 %v247, %v247
        %v249 = vmul.f32 %v248, %v248
        %v250 = vmul.f32 %v247, %v249
        %v251 = vmul.f32 %v250, %v243
        %v252 = vsel %vm242, 0.99, 0.01
        %v253 = vmul.f32 %v252, %v251
        %v254 = vld [vmem:[#allocation2] sm:$0xff]
        %v255 = vadd.f32 %v253, 0.0
        %v256 = vsub.f32 %v254, %v255
        %257 = vst [vmem:[#allocation2] sm:$0xff] %v256
        // Predicated region
        $region41: #{tpu_custom_call.1} parent=27 // pred_check
          %p258 = pneg %p234
        $region42: #{tpu_custom_call.1} parent=27 // pred_check_branch
          %260 = sbr.rel (%p258) target = $region44
        $region43: #{tpu_custom_call.1} parent=27 // pred_region
          %v261 = vld [vmem:[#allocation2] sm:$0xff]
          %262 = vst [vmem:[%s231] sm:$0xff] %v261
        $region44: #{tpu_custom_call.1} parent=27 // pred_fallthru
          _
        %s263 = sand.u32 %s111, 1
        %s264 = scalar_lea.sflag [#allocation5], %s263
        %s265 = sand.u32 %s111, 1
        %s266 = smul.addr %s265, 8
        %s267 = scalar_lea.vmem [#allocation8], %s266
        // Predicated region
        $region45: #{tpu_custom_call.1} parent=27 // pred_check
          %p268 = pneg %p121
        $region46: #{tpu_custom_call.1} parent=27 // pred_check_branch
          %270 = sbr.rel (%p268) target = $region48
        $region47: #{tpu_custom_call.1} parent=27 // pred_region
          %s272 = ssub.s32 128, 128
          %273 = vsyncadd %s264, %s272
          %s274 = sadd.s32 %s28, %s27
          %s275 = smul.addr %s274, 128
          %s276 = scalar_lea.hbm %s2, %s275
          %s278 = sshll.u32 %s267, 4
          %s279 = int_to_ptr.vmem [resolvable:$true] %s278
          %281 = dma.vmem_to_hbm [thread:$0]  %s279, 128, %s276, %s264
        $region48: #{tpu_custom_call.1} parent=27 // pred_fallthru
          _
      $region28: #{tpu_custom_call.1} parent=5 // pred_fallthru
        _
      %p282 = scmp.le.s32.totalorder 2, %s17
      // Predicated region
      $region49: #{tpu_custom_call.1} parent=5 // pred_check
        %p283 = pneg %p282
      $region50: #{tpu_custom_call.1} parent=5 // pred_check_branch
        %285 = sbr.rel (%p283) target = $region52
      $region51: #{tpu_custom_call.1} parent=5 // pred_region
        %s286 = ssub.s32 %s17, 2
        // Predicated region
        $region53: #{tpu_custom_call.1} parent=51 // pred_check
          %p287 = pneg %p127
        $region54: #{tpu_custom_call.1} parent=51 // pred_check_branch
          %289 = sbr.rel (%p287) target = $region56
        $region55: #{tpu_custom_call.1} parent=51 // pred_region
          %s290 = sand.u32 %s112, 1
          %s291 = scalar_lea.sflag [#allocation5], %s290
          %s292 = sand.u32 %s112, 1
          %s293 = smul.addr %s292, 8
          %s294 = scalar_lea.vmem [#allocation8], %s293
          %295 = dma.done %s291, 128
        $region56: #{tpu_custom_call.1} parent=51 // pred_fallthru
          _
      $region52: #{tpu_custom_call.1} parent=5 // pred_fallthru
        _
    $region6: #{tpu_custom_call.1} parent=1 // loop_footer
      %s21 = sadd.s32 1, %s17
    $region7: #{tpu_custom_call.1} parent=1 // loop_footer_branch
      %16 = sbr.rel target = $region3
    $region8: #{tpu_custom_call.1} parent=1 // loop_exit
      _
    %296 = vsyncpa [#allocation4], 1
    %s297 = scalar_lea.sflag [#allocation4], 1
    %298 = vsyncpa %s297, 1
    %299 = vsyncpa [#allocation7], 1
    %s300 = scalar_lea.sflag [#allocation7], 1
    %301 = vsyncpa %s300, 1
    %302 = vsyncpa [#allocation5], 1
    %s303 = scalar_lea.sflag [#allocation5], 1
    %304 = vsyncpa %s303, 1

</llo_original>
